<compile_context>
chip_gen: v7x
topology: tpu7x:2x2x1
jax: 0.10.0
libtpu: 0.0.40
codegen_flags: <defaults>
</compile_context>

<pallas_src>
import math

import jax
import jax.numpy as jnp
from jax.experimental import pallas as pl
from jax.experimental.pallas import tpu as pltpu


def _make_conv1d_relu_kernel(k, stride, c_in, c_out, out_lanes, use_mxu):
    """conv1d (k taps) + bias + ReLU over one pre-padded, batch-folded slab."""

    def kernel(x_ref, w_ref, b_ref, o_ref):
        # x_ref: (c_in, in_lanes)    pre-padded lane-dense input slab (compute dtype)
        # w_ref: (k, c_out, c_in)    per-tap weights (compute dtype)
        # b_ref: (c_out, 1)          bias, f32
        # o_ref: (c_out, out_lanes)  lane-dense output slab
        if not use_mxu:
            # Tiny channel counts: weights fit in a few vregs; hoist one f32 cast.
            w_all = w_ref[...].astype(jnp.float32)          # (k, c_out, c_in)

        acc = None
        for t in range(k):                                   # static, k small (=3)
            if stride == 1:
                win = x_ref[:, pl.ds(t, out_lanes)]          # contiguous lane window
            else:
                # Correct but slow path (strided lane load); stride>1 is non-default.
                win = x_ref[:, pl.ds(t, out_lanes, stride)]

            if use_mxu:
                term = jnp.dot(w_ref[t], win, preferred_element_type=jnp.float32)
                acc = term if acc is None else acc + term
            else:
                # VPU multiply-add accumulate: (c_out,1) x (1,W) broadcast per
                # (tap, in-channel) term; MXU stays idle (it would be ~empty).
                win = win.astype(jnp.float32)
                for ci in range(c_in):                       # static, c_in small
                    term = w_all[t, :, ci:ci + 1] * win[ci:ci + 1, :]
                    acc = term if acc is None else acc + term

        acc = jnp.maximum(acc + b_ref[...], 0.0)             # f32 bias + ReLU epilogue
        o_ref[...] = acc.astype(o_ref.dtype)                 # single lane-dense store

    return kernel


def _vmem_capacity_bytes():
    try:
        return int(pltpu.get_tpu_info().vmem_capacity_bytes)
    except Exception:
        return 64 * 1024 * 1024   # conservative default (v7x per-TensorCore VMEM)


def _choose_batch_tile(n, c_in, c_out, l_seg_in, l_seg_out, tail,
                       in_item, out_item, vmem_budget):
    # Fold batch elements along lanes until the output slab is ~2048+ lanes wide
    # (amortizes ~0.35 us per-grid-step overhead, keeps stores lane-dense) while
    # staying inside the per-step VMEM budget.
    nb = max(1, min(n, -(-2048 // max(l_seg_out, 1))))

    def per_step_bytes(nb_):
        in_lanes = nb_ * l_seg_in + tail
        out_lanes = nb_ * l_seg_out
        return (2 * c_in * in_lanes * in_item            # double-buffered input block
                + 2 * c_out * out_lanes * out_item       # double-buffered output block
                + (c_in * in_item + c_out * 8) * out_lanes)   # tap window + f32 acc

    while nb > 1 and per_step_bytes(nb) > vmem_budget:
        nb -= 1
    while n % nb:                                        # keep the grid exact
        nb -= 1
    # Keep >= 2 grid steps when possible so the "parallel" axis can be split
    # across TensorCores (v7x has 2 TCs per chip).
    if n // nb < 2 and n >= 2:
        nb = max(1, nb // 2)
        while n % nb:
            nb -= 1
    return nb


def encoder_block_forward(x, weight, bias, *, stride=1, padding=1,
                          compute_dtype=jnp.bfloat16):
    """EncoderBlock.forward: ReLU(Conv1d(x)).

    x: (N, C_in, L); weight: (C_out, C_in, K); bias: (C_out,).
    compute_dtype: dtype of the streamed input slab / weights (bf16 default:
    native MXU operand type on v5e/v6e/v7x and half the DMA bytes); all
    accumulation and the bias+ReLU epilogue run in f32.
    """
    n, c_in, l_in = x.shape
    c_out, c_in_w, k = weight.shape
    assert c_in_w == c_in
    l_out = (l_in + 2 * padding - k) // stride + 1
    assert l_out > 0

    # Per-batch segment lengths inside the lane-folded slabs.  The input segment
    # is exactly `stride` x the output segment, so every tap is one (possibly
    # strided) pl.ds window that lines up across all folded batch elements;
    # `tail` zero lanes at the end of each block keep the last tap's read in range.
    l_seg_out = l_out - 1 + max(1, -(-k // stride))
    l_seg_in = l_seg_out * stride
    tail = max(0, k - stride)

    out_dtype = x.dtype
    in_item = jnp.dtype(compute_dtype).itemsize
    out_item = jnp.dtype(out_dtype).itemsize

    vmem_cap = _vmem_capacity_bytes()
    vmem_budget = vmem_cap // 4                           # ~32 MiB v5e/v6e, ~16 MiB v7x
    vmem_limit = min(vmem_cap * 3 // 4, 96 * 1024 * 1024)

    nb = _choose_batch_tile(n, c_in, c_out, l_seg_in, l_seg_out, tail,
                            in_item, out_item, vmem_budget)
    g = n // nb
    in_lanes = nb * l_seg_in + tail
    out_lanes = nb * l_seg_out

    # ---- wrapper-side layout plumbing (one-time, mem-bound) ----
    # Pre-pad each sequence with the conv zero halo, then fold `nb` batch
    # elements along the lane axis -> (g, c_in, nb*l_seg_in [+ tail]).
    l_keep = min(l_in, l_seg_in - padding)
    x_lane = jnp.pad(x[:, :, :l_keep].astype(compute_dtype),
                     ((0, 0), (0, 0), (padding, l_seg_in - padding - l_keep)))
    x_lane = (x_lane.reshape(g, nb, c_in, l_seg_in)
              .transpose(0, 2, 1, 3)
              .reshape(g, c_in, nb * l_seg_in))
    if tail:
        x_lane = jnp.pad(x_lane, ((0, 0), (0, 0), (0, tail)))

    w_taps = jnp.transpose(weight, (2, 0, 1)).astype(compute_dtype)   # (k, c_out, c_in)
    b2 = bias.reshape(c_out, 1).astype(jnp.float32)

    # Tiny channel counts leave the MXU ~empty -> VPU accumulate; otherwise MXU.
    use_mxu = (c_in >= 8 and c_out >= 8)
    kernel = _make_conv1d_relu_kernel(k, stride, c_in, c_out, out_lanes, use_mxu)

    out = pl.pallas_call(
        kernel,
        out_shape=jax.ShapeDtypeStruct((g, c_out, out_lanes), out_dtype),
        grid_spec=pltpu.PrefetchScalarGridSpec(
            num_scalar_prefetch=0,
            grid=(g,),
            in_specs=[
                pl.BlockSpec((None, c_in, in_lanes), lambda i: (i, 0, 0)),
                pl.BlockSpec((k, c_out, c_in), lambda i: (0, 0, 0)),
                pl.BlockSpec((c_out, 1), lambda i: (0, 0)),
            ],
            out_specs=pl.BlockSpec((None, c_out, out_lanes), lambda i: (i, 0, 0)),
        ),
        compiler_params=pltpu.CompilerParams(
            dimension_semantics=("parallel",),
            vmem_limit_bytes=vmem_limit,
        ),
    )(x_lane, w_taps, b2)

    # Unfold batch from lanes and crop the per-segment slack back to l_out.
    out = (out.reshape(g, c_out, nb, l_seg_out)
           .transpose(0, 2, 1, 3)
           .reshape(n, c_out, l_seg_out))
    return out[:, :, :l_out]


if __name__ == "__main__":
    # Small shapes consistent with the module: N=4, C_in=4, C_out=8, L=16
    # (N=4 exercises both the batch->lane folding (nb=2) and a 2-step grid).
    N, C_IN, C_OUT, L, K, STRIDE, PAD = 4, 4, 8, 16, 3, 1, 1

    key = jax.random.PRNGKey(0)
    kx, kw, kb = jax.random.split(key, 3)

    # Deterministic init mirroring PyTorch Conv1d default (uniform +/- 1/sqrt(fan_in)).
    bound = 1.0 / math.sqrt(C_IN * K)
    weight = jax.random.uniform(kw, (C_OUT, C_IN, K), jnp.float32, -bound, bound)
    bias = jax.random.uniform(kb, (C_OUT,), jnp.float32, -bound, bound)
    x = jax.random.normal(kx, (N, C_IN, L), jnp.float32)

    # Reference: lax conv (same semantics as torch Conv1d) + bias + ReLU.
    ref = jax.lax.conv_general_dilated(
        x, weight, window_strides=(STRIDE,), padding=[(PAD, PAD)],
        dimension_numbers=("NCH", "OIH", "NCH"))
    ref = jnp.maximum(ref + bias[None, :, None], 0.0)

    # f32 operands: tight check against the XLA reference.
    out_f32 = encoder_block_forward(x, weight, bias, stride=STRIDE, padding=PAD,
                                    compute_dtype=jnp.float32)
    out_f32 = jax.block_until_ready(out_f32)
    if out_f32.shape != ref.shape or not jnp.allclose(out_f32, ref, atol=1e-5, rtol=1e-5):
        raise AssertionError("Pallas conv1d+relu (f32 operands) mismatch vs reference")

    # Default bf16 operands (f32 accumulation/epilogue): loose tolerance
    # (expected bf16 input-rounding error, not a kernel bug).
    out_bf16 = encoder_block_forward(x, weight, bias, stride=STRIDE, padding=PAD)
    out_bf16 = jax.block_until_ready(out_bf16)
    if out_bf16.shape != ref.shape or not jnp.allclose(out_bf16, ref, atol=1e-1, rtol=5e-2):
        raise AssertionError("Pallas conv1d+relu (bf16 operands) mismatch vs reference")

    print("KERNEL_OK")
</pallas_src>

<mosaic_0001>
module attributes {stable_mosaic.version = 11 : i64} {
  func.func @kernel(%arg0: i32, %arg1: memref<1x4x38xf32, #tpu.memory_space<vmem>>, %arg2: memref<3x8x4xf32, #tpu.memory_space<vmem>>, %arg3: memref<8x1xf32, #tpu.memory_space<vmem>>, %arg4: memref<1x8x36xf32, #tpu.memory_space<vmem>>) attributes {dimension_semantics = [#tpu.dimension_semantics<parallel>], iteration_bounds = array<i64: 2>, scalar_prefetch = 0 : i64, scratch_operands = 0 : i64, tpu.core_type = #tpu.core_type<tc>, window_params = [{transform_indices = @transform_0, window_bounds = array<i64: 1, 4, 38>}, {pipeline_mode = #tpu.pipeline_mode<synchronous>, transform_indices = @transform_1, window_bounds = array<i64: 3, 8, 4>}, {pipeline_mode = #tpu.pipeline_mode<synchronous>, transform_indices = @transform_2, window_bounds = array<i64: 8, 1>}, {transform_indices = @transform_3, window_bounds = array<i64: 1, 8, 36>}]} {
    %c0 = arith.constant 0 : index
    %c0_0 = arith.constant 0 : index
    %c0_1 = arith.constant 0 : index
    %0 = vector.load %arg2[%c0, %c0_0, %c0_1] : memref<3x8x4xf32, #tpu.memory_space<vmem>>, vector<3x8x4xf32>
    %c0_2 = arith.constant 0 : index
    %c0_3 = arith.constant 0 : index
    %c0_4 = arith.constant 0 : index
    %1 = vector.load %arg1[%c0_2, %c0_3, %c0_4] : memref<1x4x38xf32, #tpu.memory_space<vmem>>, vector<1x4x36xf32>
    %2 = vector.shape_cast %1 : vector<1x4x36xf32> to vector<4x36xf32>
    %3 = vector.extract_strided_slice %0 {offsets = [0, 0, 0], sizes = [1, 8, 1], strides = [1, 1, 1]} : vector<3x8x4xf32> to vector<1x8x1xf32>
    %4 = vector.shape_cast %3 : vector<1x8x1xf32> to vector<8x1xf32>
    %5 = vector.extract_strided_slice %2 {offsets = [0, 0], sizes = [1, 36], strides = [1, 1]} : vector<4x36xf32> to vector<1x36xf32>
    %6 = vector.broadcast %4 : vector<8x1xf32> to vector<8x36xf32>
    %7 = vector.broadcast %5 : vector<1x36xf32> to vector<8x36xf32>
    %8 = arith.mulf %6, %7 : vector<8x36xf32>
    %9 = vector.extract_strided_slice %0 {offsets = [0, 0, 1], sizes = [1, 8, 1], strides = [1, 1, 1]} : vector<3x8x4xf32> to vector<1x8x1xf32>
    %10 = vector.shape_cast %9 : vector<1x8x1xf32> to vector<8x1xf32>
    %11 = vector.extract_strided_slice %2 {offsets = [1, 0], sizes = [1, 36], strides = [1, 1]} : vector<4x36xf32> to vector<1x36xf32>
    %12 = vector.broadcast %10 : vector<8x1xf32> to vector<8x36xf32>
    %13 = vector.broadcast %11 : vector<1x36xf32> to vector<8x36xf32>
    %14 = arith.mulf %12, %13 : vector<8x36xf32>
    %15 = arith.addf %8, %14 : vector<8x36xf32>
    %16 = vector.extract_strided_slice %0 {offsets = [0, 0, 2], sizes = [1, 8, 1], strides = [1, 1, 1]} : vector<3x8x4xf32> to vector<1x8x1xf32>
    %17 = vector.shape_cast %16 : vector<1x8x1xf32> to vector<8x1xf32>
    %18 = vector.extract_strided_slice %2 {offsets = [2, 0], sizes = [1, 36], strides = [1, 1]} : vector<4x36xf32> to vector<1x36xf32>
    %19 = vector.broadcast %17 : vector<8x1xf32> to vector<8x36xf32>
    %20 = vector.broadcast %18 : vector<1x36xf32> to vector<8x36xf32>
    %21 = arith.mulf %19, %20 : vector<8x36xf32>
    %22 = arith.addf %15, %21 : vector<8x36xf32>
    %23 = vector.extract_strided_slice %0 {offsets = [0, 0, 3], sizes = [1, 8, 1], strides = [1, 1, 1]} : vector<3x8x4xf32> to vector<1x8x1xf32>
    %24 = vector.shape_cast %23 : vector<1x8x1xf32> to vector<8x1xf32>
    %25 = vector.extract_strided_slice %2 {offsets = [3, 0], sizes = [1, 36], strides = [1, 1]} : vector<4x36xf32> to vector<1x36xf32>
    %26 = vector.broadcast %24 : vector<8x1xf32> to vector<8x36xf32>
    %27 = vector.broadcast %25 : vector<1x36xf32> to vector<8x36xf32>
    %28 = arith.mulf %26, %27 : vector<8x36xf32>
    %29 = arith.addf %22, %28 : vector<8x36xf32>
    %c0_5 = arith.constant 0 : index
    %c0_6 = arith.constant 0 : index
    %c1 = arith.constant 1 : index
    %30 = vector.load %arg1[%c0_5, %c0_6, %c1] : memref<1x4x38xf32, #tpu.memory_space<vmem>>, vector<1x4x36xf32>
    %31 = vector.shape_cast %30 : vector<1x4x36xf32> to vector<4x36xf32>
    %32 = vector.extract_strided_slice %0 {offsets = [1, 0, 0], sizes = [1, 8, 1], strides = [1, 1, 1]} : vector<3x8x4xf32> to vector<1x8x1xf32>
    %33 = vector.shape_cast %32 : vector<1x8x1xf32> to vector<8x1xf32>
    %34 = vector.extract_strided_slice %31 {offsets = [0, 0], sizes = [1, 36], strides = [1, 1]} : vector<4x36xf32> to vector<1x36xf32>
    %35 = vector.broadcast %33 : vector<8x1xf32> to vector<8x36xf32>
    %36 = vector.broadcast %34 : vector<1x36xf32> to vector<8x36xf32>
    %37 = arith.mulf %35, %36 : vector<8x36xf32>
    %38 = arith.addf %29, %37 : vector<8x36xf32>
    %39 = vector.extract_strided_slice %0 {offsets = [1, 0, 1], sizes = [1, 8, 1], strides = [1, 1, 1]} : vector<3x8x4xf32> to vector<1x8x1xf32>
    %40 = vector.shape_cast %39 : vector<1x8x1xf32> to vector<8x1xf32>
    %41 = vector.extract_strided_slice %31 {offsets = [1, 0], sizes = [1, 36], strides = [1, 1]} : vector<4x36xf32> to vector<1x36xf32>
    %42 = vector.broadcast %40 : vector<8x1xf32> to vector<8x36xf32>
    %43 = vector.broadcast %41 : vector<1x36xf32> to vector<8x36xf32>
    %44 = arith.mulf %42, %43 : vector<8x36xf32>
    %45 = arith.addf %38, %44 : vector<8x36xf32>
    %46 = vector.extract_strided_slice %0 {offsets = [1, 0, 2], sizes = [1, 8, 1], strides = [1, 1, 1]} : vector<3x8x4xf32> to vector<1x8x1xf32>
    %47 = vector.shape_cast %46 : vector<1x8x1xf32> to vector<8x1xf32>
    %48 = vector.extract_strided_slice %31 {offsets = [2, 0], sizes = [1, 36], strides = [1, 1]} : vector<4x36xf32> to vector<1x36xf32>
    %49 = vector.broadcast %47 : vector<8x1xf32> to vector<8x36xf32>
    %50 = vector.broadcast %48 : vector<1x36xf32> to vector<8x36xf32>
    %51 = arith.mulf %49, %50 : vector<8x36xf32>
    %52 = arith.addf %45, %51 : vector<8x36xf32>
    %53 = vector.extract_strided_slice %0 {offsets = [1, 0, 3], sizes = [1, 8, 1], strides = [1, 1, 1]} : vector<3x8x4xf32> to vector<1x8x1xf32>
    %54 = vector.shape_cast %53 : vector<1x8x1xf32> to vector<8x1xf32>
    %55 = vector.extract_strided_slice %31 {offsets = [3, 0], sizes = [1, 36], strides = [1, 1]} : vector<4x36xf32> to vector<1x36xf32>
    %56 = vector.broadcast %54 : vector<8x1xf32> to vector<8x36xf32>
    %57 = vector.broadcast %55 : vector<1x36xf32> to vector<8x36xf32>
    %58 = arith.mulf %56, %57 : vector<8x36xf32>
    %59 = arith.addf %52, %58 : vector<8x36xf32>
    %c0_7 = arith.constant 0 : index
    %c0_8 = arith.constant 0 : index
    %c2 = arith.constant 2 : index
    %60 = vector.load %arg1[%c0_7, %c0_8, %c2] : memref<1x4x38xf32, #tpu.memory_space<vmem>>, vector<1x4x36xf32>
    %61 = vector.shape_cast %60 : vector<1x4x36xf32> to vector<4x36xf32>
    %62 = vector.extract_strided_slice %0 {offsets = [2, 0, 0], sizes = [1, 8, 1], strides = [1, 1, 1]} : vector<3x8x4xf32> to vector<1x8x1xf32>
    %63 = vector.shape_cast %62 : vector<1x8x1xf32> to vector<8x1xf32>
    %64 = vector.extract_strided_slice %61 {offsets = [0, 0], sizes = [1, 36], strides = [1, 1]} : vector<4x36xf32> to vector<1x36xf32>
    %65 = vector.broadcast %63 : vector<8x1xf32> to vector<8x36xf32>
    %66 = vector.broadcast %64 : vector<1x36xf32> to vector<8x36xf32>
    %67 = arith.mulf %65, %66 : vector<8x36xf32>
    %68 = arith.addf %59, %67 : vector<8x36xf32>
    %69 = vector.extract_strided_slice %0 {offsets = [2, 0, 1], sizes = [1, 8, 1], strides = [1, 1, 1]} : vector<3x8x4xf32> to vector<1x8x1xf32>
    %70 = vector.shape_cast %69 : vector<1x8x1xf32> to vector<8x1xf32>
    %71 = vector.extract_strided_slice %61 {offsets = [1, 0], sizes = [1, 36], strides = [1, 1]} : vector<4x36xf32> to vector<1x36xf32>
    %72 = vector.broadcast %70 : vector<8x1xf32> to vector<8x36xf32>
    %73 = vector.broadcast %71 : vector<1x36xf32> to vector<8x36xf32>
    %74 = arith.mulf %72, %73 : vector<8x36xf32>
    %75 = arith.addf %68, %74 : vector<8x36xf32>
    %76 = vector.extract_strided_slice %0 {offsets = [2, 0, 2], sizes = [1, 8, 1], strides = [1, 1, 1]} : vector<3x8x4xf32> to vector<1x8x1xf32>
    %77 = vector.shape_cast %76 : vector<1x8x1xf32> to vector<8x1xf32>
    %78 = vector.extract_strided_slice %61 {offsets = [2, 0], sizes = [1, 36], strides = [1, 1]} : vector<4x36xf32> to vector<1x36xf32>
    %79 = vector.broadcast %77 : vector<8x1xf32> to vector<8x36xf32>
    %80 = vector.broadcast %78 : vector<1x36xf32> to vector<8x36xf32>
    %81 = arith.mulf %79, %80 : vector<8x36xf32>
    %82 = arith.addf %75, %81 : vector<8x36xf32>
    %83 = vector.extract_strided_slice %0 {offsets = [2, 0, 3], sizes = [1, 8, 1], strides = [1, 1, 1]} : vector<3x8x4xf32> to vector<1x8x1xf32>
    %84 = vector.shape_cast %83 : vector<1x8x1xf32> to vector<8x1xf32>
    %85 = vector.extract_strided_slice %61 {offsets = [3, 0], sizes = [1, 36], strides = [1, 1]} : vector<4x36xf32> to vector<1x36xf32>
    %86 = vector.broadcast %84 : vector<8x1xf32> to vector<8x36xf32>
    %87 = vector.broadcast %85 : vector<1x36xf32> to vector<8x36xf32>
    %88 = arith.mulf %86, %87 : vector<8x36xf32>
    %89 = arith.addf %82, %88 : vector<8x36xf32>
    %c0_9 = arith.constant 0 : index
    %c0_10 = arith.constant 0 : index
    %90 = vector.load %arg3[%c0_9, %c0_10] : memref<8x1xf32, #tpu.memory_space<vmem>>, vector<8x1xf32>
    %91 = vector.broadcast %90 : vector<8x1xf32> to vector<8x36xf32>
    %92 = arith.addf %89, %91 : vector<8x36xf32>
    %cst = arith.constant 0.000000e+00 : f32
    %93 = vector.broadcast %cst : f32 to vector<8x36xf32>
    %94 = arith.maximumf %92, %93 : vector<8x36xf32>
    %c0_11 = arith.constant 0 : index
    %c0_12 = arith.constant 0 : index
    %c0_13 = arith.constant 0 : index
    %95 = vector.load %arg4[%c0_11, %c0_12, %c0_13] : memref<1x8x36xf32, #tpu.memory_space<vmem>>, vector<1x8x36xf32>
    %96 = vector.shape_cast %95 : vector<1x8x36xf32> to vector<8x36xf32>
    %97 = vector.shape_cast %94 : vector<8x36xf32> to vector<1x8x36xf32>
    tpu.vector_store %arg4[%c0_11, %c0_12, %c0_13], %97 {strides = array<i32>} : memref<1x8x36xf32, #tpu.memory_space<vmem>>, vector<1x8x36xf32>,
    return
  }
  func.func @transform_0(%arg0: i32) -> (i32, i32, i32) {
    %c0_i32 = arith.constant 0 : i32
    %c0_i32_0 = arith.constant 0 : i32
    %c0_i32_1 = arith.constant 0 : i32
    return %arg0, %c0_i32, %c0_i32_0 : i32, i32, i32
  }
  func.func @transform_1(%arg0: i32) -> (i32, i32, i32) {
    %c0_i32 = arith.constant 0 : i32
    %c0_i32_0 = arith.constant 0 : i32
    %c0_i32_1 = arith.constant 0 : i32
    %c0_i32_2 = arith.constant 0 : i32
    return %c0_i32, %c0_i32_0, %c0_i32_1 : i32, i32, i32
  }
  func.func @transform_2(%arg0: i32) -> (i32, i32) {
    %c0_i32 = arith.constant 0 : i32
    %c0_i32_0 = arith.constant 0 : i32
    %c0_i32_1 = arith.constant 0 : i32
    return %c0_i32, %c0_i32_0 : i32, i32
  }
  func.func @transform_3(%arg0: i32) -> (i32, i32, i32) {
    %c0_i32 = arith.constant 0 : i32
    %c0_i32_0 = arith.constant 0 : i32
    %c0_i32_1 = arith.constant 0 : i32
    return %arg0, %c0_i32, %c0_i32_0 : i32, i32, i32
  }
}

</mosaic_0001>

<llo_original>
// kernel: tpu_custom_call.1
$region0: #{tpu_custom_call.1}
  #allocation0 [shape = 'u32[]', space=smem, size = 0x4, offset = 0x4, fixed_abs, tag = 'smem constant byte address 0x4 - core index']
  #allocation1 [shape = 'u32[144,128]{1,0:T(1,128)}', space=vmem, size = 0x12000, scoped, tag = 'internal scratch']
  %s0 = inlined_call_operand.vmem [shape: f32[2,4,38], index: 0, kind: input, shape index: {}]
  %s1 = inlined_call_operand.vmem [shape: f32[3,8,4], index: 1, kind: input, shape index: {}]
  %s2 = inlined_call_operand.vmem [shape: f32[8,1], index: 2, kind: input, shape index: {}]
  %s3 = inlined_call_operand.hbm [shape: f32[2,8,36], index: 3, kind: output, shape index: {}]
  %s4 = sld [smem:[#allocation0]]
  $region45: #{tpu_custom_call.1} parent=0
    _
  %s6 = ssub.s32 1, %s4
  %s7 = scalar_select 0, %s6, %s4
  $region1: #{tpu_custom_call.1} parent=0
    #allocation2 [shape = 'u8[8192]{0}', space=vmem, size = 0x2000, scoped, tag = 'output window, operand 0']
    #allocation3 [shape = 's32[2]{0}', space=sflag, size = 0x8, scoped, tag = 'scoped memory for tpu_custom_call.1']
    %8 = vsyncpa [#allocation3], 0
    %s9 = scalar_lea.sflag [#allocation3], 1
    %10 = vsyncpa %s9, 0
    loop: start=0, step=1, limit=4
    $region2: #{tpu_custom_call.1} parent=1 // loop_pre_header
      _
    $region3: #{tpu_custom_call.1} parent=1 // loop_header
      %s12 = sphi 0, %s16
      %p13 = scmp.ge.s32.totalorder %s12, 4
      %s22 = sphi 0, %s24
      %s25 = sphi 0, %s22
      %s26 = sphi 0, %s25
      %s42 = sphi 0, %s26
      %s46 = sphi 0, %s46
      %s48 = sphi 0, %s46
      %s49 = sphi 0, %s48
      %s63 = sphi 0, %s49
      %s67 = sphi 0, %s67
      %s69 = sphi 0, %s67
      %s70 = sphi 0, %s69
      %s84 = sphi 0, %s70
      %s90 = sphi 0, %s92
      %s93 = sphi 0, %s90
      %s94 = sphi 0, %s93
      %s110 = sphi 0, %s94
    $region4: #{tpu_custom_call.1} parent=1 // loop_header_branch
      %15 = sbr.rel (%p13) target = $region8
    $region5: #{tpu_custom_call.1} parent=1 // loop_body
      %s17 = ssub.s32 %s12, 1
      %s18 = ssub.s32 %s12, 2
      %s19 = sadd.s32 %s12, 1
      %s20 = ssub.s32 %s12, %s19
      %p21 = scmp.eq.s32.totalorder %s20, 0
      %s23 = sadd.s32 %s22, 1
      %s24 = scalar_select %p21, %s22, %s23
      %p27 = pneg %p21
      %p28 = scmp.eq.s32.totalorder %s12, 1
      %p29 = por %p27, %p28
      %p30 = scmp.ne.s32.totalorder %s22, %s25
      %p31 = scmp.eq.s32.totalorder %s12, 0
      %p32 = por %p30, %p31
      %p33 = scmp.ne.s32.totalorder %s22, %s25
      %p34 = scmp.eq.s32.totalorder %s17, 1
      %p35 = por %p33, %p34
      %p36 = scmp.ne.s32.totalorder %s25, %s26
      %p37 = scmp.eq.s32.totalorder %s17, 0
      %p38 = por %p36, %p37
      %p39 = scmp.ne.s32.totalorder %s25, %s26
      %p40 = scmp.eq.s32.totalorder %s18, 1
      %p41 = por %p39, %p40
      %p43 = scmp.ne.s32.totalorder %s26, %s42
      %p44 = scmp.eq.s32.totalorder %s18, 0
      %p45 = por %p43, %p44
      %s47 = sadd.s32 %s46, 1
      %p50 = scmp.eq.s32.totalorder %s12, 1
      %p51 = scmp.ne.s32.totalorder %s46, %s48
      %p52 = scmp.eq.s32.totalorder %s12, 0
      %p53 = por %p51, %p52
      %p54 = scmp.ne.s32.totalorder %s46, %s48
      %p55 = scmp.eq.s32.totalorder %s17, 1
      %p56 = por %p54, %p55
      %p57 = scmp.ne.s32.totalorder %s48, %s49
      %p58 = scmp.eq.s32.totalorder %s17, 0
      %p59 = por %p57, %p58
      %p60 = scmp.ne.s32.totalorder %s48, %s49
      %p61 = scmp.eq.s32.totalorder %s18, 1
      %p62 = por %p60, %p61
      %p64 = scmp.ne.s32.totalorder %s49, %s63
      %p65 = scmp.eq.s32.totalorder %s18, 0
      %p66 = por %p64, %p65
      %s68 = sadd.s32 %s67, 1
      %p71 = scmp.eq.s32.totalorder %s12, 1
      %p72 = scmp.ne.s32.totalorder %s67, %s69
      %p73 = scmp.eq.s32.totalorder %s12, 0
      %p74 = por %p72, %p73
      %p75 = scmp.ne.s32.totalorder %s67, %s69
      %p76 = scmp.eq.s32.totalorder %s17, 1
      %p77 = por %p75, %p76
      %p78 = scmp.ne.s32.totalorder %s69, %s70
      %p79 = scmp.eq.s32.totalorder %s17, 0
      %p80 = por %p78, %p79
      %p81 = scmp.ne.s32.totalorder %s69, %s70
      %p82 = scmp.eq.s32.totalorder %s18, 1
      %p83 = por %p81, %p82
      %p85 = scmp.ne.s32.totalorder %s70, %s84
      %p86 = scmp.eq.s32.totalorder %s18, 0
      %p87 = por %p85, %p86
      %s88 = ssub.s32 %s12, %s19
      %p89 = scmp.eq.s32.totalorder %s88, 0
      %s91 = sadd.s32 %s90, 1
      %s92 = scalar_select %p89, %s90, %s91
      %p95 = pneg %p89
      %p96 = scmp.eq.s32.totalorder %s12, 1
      %p97 = por %p95, %p96
      %p98 = scmp.ne.s32.totalorder %s90, %s93
      %p99 = scmp.eq.s32.totalorder %s12, 0
      %p100 = por %p98, %p99
      %p101 = scmp.ne.s32.totalorder %s90, %s93
      %p102 = scmp.eq.s32.totalorder %s17, 1
      %p103 = por %p101, %p102
      %p104 = scmp.ne.s32.totalorder %s93, %s94
      %p105 = scmp.eq.s32.totalorder %s17, 0
      %p106 = por %p104, %p105
      %p107 = scmp.ne.s32.totalorder %s93, %s94
      %p108 = scmp.eq.s32.totalorder %s18, 1
      %p109 = por %p107, %p108
      %p111 = scmp.ne.s32.totalorder %s94, %s110
      %p112 = scmp.eq.s32.totalorder %s18, 0
      %p113 = por %p111, %p112
      %p114 = scmp.le.s32.totalorder 1, %s12
      %p115 = scmp.lt.s32.totalorder %s12, 3
      %p116 = pnand %p114, %p115
      %p117 = pneg %p116
      // Predicated region
      $region9: #{tpu_custom_call.1} parent=5 // pred_check
        _
      $region10: #{tpu_custom_call.1} parent=5 // pred_check_branch
        %119 = sbr.rel (%p116) target = $region12
      $region11: #{tpu_custom_call.1} parent=5 // pred_region
        %s120 = ssub.s32 %s12, 1
        // Predicated region
        $region13: #{tpu_custom_call.1} parent=11 // pred_check
          %p121 = pneg %p59
        $region14: #{tpu_custom_call.1} parent=11 // pred_check_branch
          %123 = sbr.rel (%p121) target = $region16
        $region15: #{tpu_custom_call.1} parent=11 // pred_region
          _
        $region16: #{tpu_custom_call.1} parent=11 // pred_fallthru
          _
        // Predicated region
        $region17: #{tpu_custom_call.1} parent=11 // pred_check
          %p124 = pneg %p80
        $region18: #{tpu_custom_call.1} parent=11 // pred_check_branch
          %126 = sbr.rel (%p124) target = $region20
        $region19: #{tpu_custom_call.1} parent=11 // pred_region
          _
        $region20: #{tpu_custom_call.1} parent=11 // pred_fallthru
          _
      $region12: #{tpu_custom_call.1} parent=5 // pred_fallthru
        _
      %p127 = scmp.lt.s32.totalorder %s12, 2
      // Predicated region
      $region21: #{tpu_custom_call.1} parent=5 // pred_check
        %p128 = pneg %p127
      $region22: #{tpu_custom_call.1} parent=5 // pred_check_branch
        %130 = sbr.rel (%p128) target = $region24
      $region23: #{tpu_custom_call.1} parent=5 // pred_region
        // Predicated region
        $region25: #{tpu_custom_call.1} parent=23 // pred_check
          %p131 = pneg %p32
        $region26: #{tpu_custom_call.1} parent=23 // pred_check_branch
          %133 = sbr.rel (%p131) target = $region28
        $region27: #{tpu_custom_call.1} parent=23 // pred_region
          %p134 = scmp.lt.s32.totalorder %s12, 1
          %s135 = scalar_select %p134, %s12, 1
          %s136 = smul.addr %s135, 4
          %s137 = scalar_lea.vmem %s0, %s136
        $region28: #{tpu_custom_call.1} parent=23 // pred_fallthru
          _
      $region24: #{tpu_custom_call.1} parent=5 // pred_fallthru
        _
      %p138 = scmp.le.s32.totalorder 1, %s12
      %p139 = scmp.lt.s32.totalorder %s12, 3
      %p140 = pnand %p138, %p139
      %p141 = pneg %p140
      // Predicated region
      $region29: #{tpu_custom_call.1} parent=5 // pred_check
        _
      $region30: #{tpu_custom_call.1} parent=5 // pred_check_branch
        %143 = sbr.rel (%p140) target = $region32
      $region31: #{tpu_custom_call.1} parent=5 // pred_region
        %s144 = ssub.s32 %s12, 1
        %p145 = scmp.lt.s32.totalorder %s17, 1
        %s146 = scalar_select %p145, %s17, 1
        %s147 = smul.addr %s146, 4
        %s148 = scalar_lea.vmem %s0, %s147
        %p149 = pneg %p38
        %p150 = pneg %p35
        %p151 = pneg %p59
        %p152 = pneg %p56
        %p153 = pneg %p80
        %p154 = pneg %p77
        %p155 = pneg %p106
        %p156 = pneg %p103
        %s157 = sand.u32 %s93, 1
        %s158 = scalar_lea.sflag [#allocation3], %s157
        %s159 = sand.u32 %s93, 1
        %s160 = smul.addr %s159, 8
        %s161 = scalar_lea.vmem [#allocation2], %s160
        %p162 = scmp.lt.s32.totalorder %s17, 1
        %s163 = scalar_select %p162, %s17, 1
        %s164 = smul.addr %s163, 4
        %s165 = scalar_lea.vmem %s0, %s164
        %v166 = vld [vmem:[%s1] sm:$0xff]
        %v167 = vld [vmem:[%s1 + $0x8] sm:$0xff]
        %v168 = vld [vmem:[%s1 + $0x10] sm:$0xff]
        %v169 = vld [vmem:[%s165] sm:$0xf]
        %171 = vset.pattern.permute.xlu0 0
        %172 = vperm.xlu0 %171, %v166
        %v173 = vpop.permute.xlu0 %172
        %v175 = vlaneseq
        %v176 = vshrl.u32 %v175, 7
        %v177 = vsub.s32 0, %v176
        %v178 = vrot.slane %v169, %v177
        %v179 = vmul.f32 %v173, %v178
        %180 = vset.pattern.permute.xlu0 1
        %181 = vperm.xlu0 %180, %v166
        %v182 = vpop.permute.xlu0 %181
        %v184 = vlaneseq
        %v185 = vshrl.u32 %v184, 7
        %v186 = vsub.s32 1, %v185
        %v187 = vrot.slane %v169, %v186
        %v188 = vmul.f32 %v182, %v187
        %v189 = vadd.f32 %v179, %v188
        %190 = vset.pattern.permute.xlu0 2
        %191 = vperm.xlu0 %190, %v166
        %v192 = vpop.permute.xlu0 %191
        %v194 = vlaneseq
        %v195 = vshrl.u32 %v194, 7
        %v196 = vsub.s32 2, %v195
        %v197 = vrot.slane %v169, %v196
        %v198 = vmul.f32 %v192, %v197
        %v199 = vadd.f32 %v189, %v198
        %200 = vset.pattern.permute.xlu0 3
        %201 = vperm.xlu0 %200, %v166
        %v202 = vpop.permute.xlu0 %201
        %v204 = vlaneseq
        %v205 = vshrl.u32 %v204, 7
        %v206 = vsub.s32 3, %v205
        %v207 = vrot.slane %v169, %v206
        %v208 = vmul.f32 %v202, %v207
        %v209 = vadd.f32 %v199, %v208
        %211 = vset.pattern.permute.xlu0 0
        %212 = vperm.xlu0 %211, %v167
        %v213 = vpop.permute.xlu0 %212
        %v215 = vmul.f32 %v213, %v178
        %217 = vrot.lane.b32.xlu0 %v215, 127
        %v218 = vpop.permute.xlu0 %217
        %v220 = vadd.f32 %v209, %v218
        %221 = vset.pattern.permute.xlu0 1
        %222 = vperm.xlu0 %221, %v167
        %v223 = vpop.permute.xlu0 %222
        %v225 = vmul.f32 %v223, %v187
        %227 = vrot.lane.b32.xlu0 %v225, 127
        %v228 = vpop.permute.xlu0 %227
        %v230 = vadd.f32 %v220, %v228
        %231 = vset.pattern.permute.xlu0 2
        %232 = vperm.xlu0 %231, %v167
        %v233 = vpop.permute.xlu0 %232
        %v235 = vmul.f32 %v233, %v197
        %237 = vrot.lane.b32.xlu0 %v235, 127
        %v238 = vpop.permute.xlu0 %237
        %v240 = vadd.f32 %v230, %v238
        %241 = vset.pattern.permute.xlu0 3
        %242 = vperm.xlu0 %241, %v167
        %v243 = vpop.permute.xlu0 %242
        %v245 = vmul.f32 %v243, %v207
        %247 = vrot.lane.b32.xlu0 %v245, 127
        %v248 = vpop.permute.xlu0 %247
        %v250 = vadd.f32 %v240, %v248
        %252 = vset.pattern.permute.xlu0 0
        %253 = vperm.xlu0 %252, %v168
        %v254 = vpop.permute.xlu0 %253
        %v256 = vmul.f32 %v254, %v178
        %258 = vrot.lane.b32.xlu0 %v256, 126
        %v259 = vpop.permute.xlu0 %258
        %v261 = vadd.f32 %v250, %v259
        %262 = vset.pattern.permute.xlu0 1
        %263 = vperm.xlu0 %262, %v168
        %v264 = vpop.permute.xlu0 %263
        %v266 = vmul.f32 %v264, %v187
        %268 = vrot.lane.b32.xlu0 %v266, 126
        %v269 = vpop.permute.xlu0 %268
        %v271 = vadd.f32 %v261, %v269
        %272 = vset.pattern.permute.xlu0 2
        %273 = vperm.xlu0 %272, %v168
        %v274 = vpop.permute.xlu0 %273
        %v276 = vmul.f32 %v274, %v197
        %278 = vrot.lane.b32.xlu0 %v276, 126
        %v279 = vpop.permute.xlu0 %278
        %v281 = vadd.f32 %v271, %v279
        %282 = vset.pattern.permute.xlu0 3
        %283 = vperm.xlu0 %282, %v168
        %v284 = vpop.permute.xlu0 %283
        %v286 = vmul.f32 %v284, %v207
        %288 = vrot.lane.b32.xlu0 %v286, 126
        %v289 = vpop.permute.xlu0 %288
        %v291 = vadd.f32 %v281, %v289
        %v292 = vld [vmem:[%s2] sm:$0xff]
        %294 = vset.pattern.permute.xlu0 0
        %295 = vperm.xlu0 %294, %v292
        %v296 = vpop.permute.xlu0 %295
        %v298 = vadd.f32 %v291, %v296
        %v299 = vmax.f32 %v298, 0.0
        %vm300 = vcmask 293888
        %301 = vst.msk [vmem:[%s161] sm:$0xff] %vm300, %v299
        %s302 = sand.u32 %s93, 1
        %s303 = scalar_lea.sflag [#allocation3], %s302
        %s304 = sand.u32 %s93, 1
        %s305 = smul.addr %s304, 8
        %s306 = scalar_lea.vmem [#allocation2], %s305
        // Predicated region
        $region33: #{tpu_custom_call.1} parent=31 // pred_check
          %p307 = pneg %p103
        $region34: #{tpu_custom_call.1} parent=31 // pred_check_branch
          %309 = sbr.rel (%p307) target = $region36
        $region35: #{tpu_custom_call.1} parent=31 // pred_region
          %s311 = ssub.s32 128, 128
          %312 = vsyncadd %s303, %s311
          %s313 = smul.addr %s17, 128
          %s314 = scalar_lea.hbm %s3, %s313
          %s316 = sshll.u32 %s306, 4
          %s317 = int_to_ptr.vmem [resolvable:$true] %s316
          %319 = dma.vmem_to_hbm [thread:$0]  %s317, 128, %s314, %s303
        $region36: #{tpu_custom_call.1} parent=31 // pred_fallthru
          _
      $region32: #{tpu_custom_call.1} parent=5 // pred_fallthru
        _
      %p320 = scmp.le.s32.totalorder 2, %s12
      // Predicated region
      $region37: #{tpu_custom_call.1} parent=5 // pred_check
        %p321 = pneg %p320
      $region38: #{tpu_custom_call.1} parent=5 // pred_check_branch
        %323 = sbr.rel (%p321) target = $region40
      $region39: #{tpu_custom_call.1} parent=5 // pred_region
        %s324 = ssub.s32 %s12, 2
        // Predicated region
        $region41: #{tpu_custom_call.1} parent=39 // pred_check
          %p325 = pneg %p109
        $region42: #{tpu_custom_call.1} parent=39 // pred_check_branch
          %327 = sbr.rel (%p325) target = $region44
        $region43: #{tpu_custom_call.1} parent=39 // pred_region
          %s328 = sand.u32 %s94, 1
          %s329 = scalar_lea.sflag [#allocation3], %s328
          %s330 = sand.u32 %s94, 1
          %s331 = smul.addr %s330, 8
          %s332 = scalar_lea.vmem [#allocation2], %s331
          %333 = dma.done %s329, 128
        $region44: #{tpu_custom_call.1} parent=39 // pred_fallthru
          _
      $region40: #{tpu_custom_call.1} parent=5 // pred_fallthru
        _
    $region6: #{tpu_custom_call.1} parent=1 // loop_footer
      %s16 = sadd.s32 1, %s12
    $region7: #{tpu_custom_call.1} parent=1 // loop_footer_branch
      %11 = sbr.rel target = $region3
    $region8: #{tpu_custom_call.1} parent=1 // loop_exit
      _
    %334 = vsyncpa [#allocation3], 1
    %s335 = scalar_lea.sflag [#allocation3], 1
    %336 = vsyncpa %s335, 1

</llo_original>
